<compile_context>
chip_gen: v7x
topology: tpu7x:2x2x1
jax: 0.10.0
libtpu: 0.0.40
codegen_flags: <defaults>
</compile_context>

<pallas_src>
import jax
import jax.numpy as jnp
from jax.experimental import pallas as pl
from jax.experimental.pallas import tpu as pltpu


def _round_up(a: int, b: int) -> int:
    return (a + b - 1) // b * b


_RESIDENT_W1_BYTES = 4 * 1024 * 1024   # keep W1 fully VMEM-resident below this
_KTILE = 4096                          # reduction tile for the large-D fallback
_X_TILE_BYTES = 4 * 1024 * 1024        # cap per-buffer x tile footprint


def _fused_kernel(x_ref, w1_ref, b1_ref, w2_ref, b2_ref, out_ref):
    """Whole fc1 -> Dropout(eval) -> ReLU -> fc2 for one batch tile (W1 resident)."""
    x = x_ref[...].astype(w1_ref.dtype)              # in-kernel cast, hides under MXU
    h = jnp.dot(x, w1_ref[...], preferred_element_type=jnp.float32)
    h = jnp.maximum(h + b1_ref[...], 0.0)            # bias + ReLU in f32 (v5e-safe VPU)
    o = jnp.dot(h.astype(w2_ref.dtype), w2_ref[...],
                preferred_element_type=jnp.float32)
    out_ref[...] = (o + b2_ref[...]).astype(out_ref.dtype)


def _ktiled_kernel(x_ref, w1_ref, b1_ref, w2_ref, b2_ref, out_ref, acc_ref):
    """Fallback for very large in_size: fc1 K-reduction + fused epilogue."""
    k = pl.program_id(1)

    @pl.when(k == 0)
    def _():
        acc_ref[...] = jnp.zeros_like(acc_ref)

    acc_ref[...] += jnp.dot(x_ref[...].astype(w1_ref.dtype), w1_ref[...],
                            preferred_element_type=jnp.float32)

    @pl.when(k == pl.num_programs(1) - 1)
    def _():
        h = jnp.maximum(acc_ref[...] + b1_ref[...], 0.0)
        o = jnp.dot(h.astype(w2_ref.dtype), w2_ref[...],
                    preferred_element_type=jnp.float32)
        out_ref[...] = (o + b2_ref[...]).astype(out_ref.dtype)


def prepare_params(w1, b1, w2, b2, *, compute_dtype=jnp.bfloat16):
    """Pad/cast the (static) weights once, outside the forward.

    Weights are stored (in_features, out_features), i.e. transposed relative to
    torch.nn.Linear, so the kernel computes plain x @ W + b.
    """
    D, H = w1.shape
    n_classes = w2.shape[1]
    itemsize = jnp.dtype(compute_dtype).itemsize

    H_pad = _round_up(max(H, 128), 128)            # hidden -> lane-dense (don't over-pad)
    C_pad = _round_up(max(n_classes, 128), 128)    # output -> unmasked stores
    D_pad = _round_up(D, 128)
    resident = D_pad * H_pad * itemsize <= _RESIDENT_W1_BYTES
    if not resident:
        D_pad = _round_up(D, _KTILE)

    # Zero padding is numerically inert through matmul / bias / ReLU.
    w1_p = jnp.zeros((D_pad, H_pad), compute_dtype).at[:D, :H].set(
        w1.astype(compute_dtype))
    w2_p = jnp.zeros((H_pad, C_pad), compute_dtype).at[:H, :n_classes].set(
        w2.astype(compute_dtype))
    b1_p = jnp.zeros((1, H_pad), jnp.float32).at[0, :H].set(b1.astype(jnp.float32))
    b2_p = jnp.zeros((1, C_pad), jnp.float32).at[0, :n_classes].set(
        b2.astype(jnp.float32))
    return dict(w1=w1_p, b1=b1_p, w2=w2_p, b2=b2_p,
                in_size=D, n_classes=n_classes, resident=resident)


def classifier_forward(x, params):
    """x: (B, C, H, W) or (B, D). Returns (B, n_classes) in x's dtype."""
    w1_p, b1_p, w2_p, b2_p = params["w1"], params["b1"], params["w2"], params["b2"]
    D = params["in_size"]
    n_classes = params["n_classes"]
    resident = params["resident"]

    B = x.shape[0]
    x2d = x.reshape(B, -1)                          # torch: x.view(B, -1)
    assert x2d.shape[1] == D, "flattened input size mismatch"
    out_dtype = x2d.dtype

    D_pad, H_pad = w1_p.shape
    C_pad = w2_p.shape[1]
    x_itemsize = jnp.dtype(x2d.dtype).itemsize
    w_itemsize = jnp.dtype(w1_p.dtype).itemsize

    # Batch tile: sublane multiple, capped by VMEM footprint of one x buffer.
    k_extent = D_pad if resident else _KTILE
    tb_vmem = max(8, (_X_TILE_BYTES // (k_extent * x_itemsize)) // 8 * 8)
    TB = min(512, tb_vmem, _round_up(B, 8))
    B_pad = _round_up(B, TB)

    # Only pad/copy x when strictly needed.
    if B_pad != B or D_pad != D:
        x_in = jnp.zeros((B_pad, D_pad), x2d.dtype).at[:B, :D].set(x2d)
    else:
        x_in = x2d

    cost = pl.CostEstimate(
        flops=2 * B_pad * D_pad * H_pad + 2 * B_pad * H_pad * C_pad,
        transcendentals=0,
        bytes_accessed=(B_pad * D_pad * x_itemsize
                        + (B_pad // TB) * D_pad * H_pad * w_itemsize
                        + H_pad * C_pad * w_itemsize
                        + B_pad * C_pad * jnp.dtype(out_dtype).itemsize),
    )

    if resident:
        kernel = _fused_kernel
        dims = ("parallel",)
        grid_spec = pltpu.PrefetchScalarGridSpec(
            num_scalar_prefetch=0,
            grid=(B_pad // TB,),
            in_specs=[
                pl.BlockSpec((TB, D_pad), lambda i: (i, 0)),        # x tile (full K)
                pl.BlockSpec((D_pad, H_pad), lambda i: (0, 0)),     # W1 (resident)
                pl.BlockSpec((1, H_pad), lambda i: (0, 0)),         # b1 (resident)
                pl.BlockSpec((H_pad, C_pad), lambda i: (0, 0)),     # W2 (resident)
                pl.BlockSpec((1, C_pad), lambda i: (0, 0)),         # b2 (resident)
            ],
            out_specs=pl.BlockSpec((TB, C_pad), lambda i: (i, 0)),
        )
    else:
        kernel = _ktiled_kernel
        dims = ("parallel", "arbitrary")
        grid_spec = pltpu.PrefetchScalarGridSpec(
            num_scalar_prefetch=0,
            grid=(B_pad // TB, D_pad // _KTILE),
            in_specs=[
                pl.BlockSpec((TB, _KTILE), lambda i, k: (i, k)),       # x tile
                pl.BlockSpec((_KTILE, H_pad), lambda i, k: (k, 0)),    # W1 K-chunk
                pl.BlockSpec((1, H_pad), lambda i, k: (0, 0)),         # b1
                pl.BlockSpec((H_pad, C_pad), lambda i, k: (0, 0)),     # W2
                pl.BlockSpec((1, C_pad), lambda i, k: (0, 0)),         # b2
            ],
            out_specs=pl.BlockSpec((TB, C_pad), lambda i, k: (i, 0)),
            scratch_shapes=[pltpu.VMEM((TB, H_pad), jnp.float32)],
        )

    out_p = pl.pallas_call(
        kernel,
        out_shape=jax.ShapeDtypeStruct((B_pad, C_pad), out_dtype),
        grid_spec=grid_spec,
        compiler_params=pltpu.CompilerParams(
            dimension_semantics=dims,
            vmem_limit_bytes=32 * 1024 * 1024,
        ),
        cost_estimate=cost,
    )(x_in, w1_p, b1_p, w2_p, b2_p)

    return out_p[:B, :n_classes]


def init_params(key, in_size, hidden=100, n_classes=10, dtype=jnp.float32):
    """Mimics torch.nn.Linear default init: U(-1/sqrt(fan_in), +1/sqrt(fan_in))."""
    k1, k2, k3, k4 = jax.random.split(key, 4)
    lim1 = 1.0 / (in_size ** 0.5)
    lim2 = 1.0 / (hidden ** 0.5)
    w1 = jax.random.uniform(k1, (in_size, hidden), dtype, -lim1, lim1)
    b1 = jax.random.uniform(k2, (hidden,), dtype, -lim1, lim1)
    w2 = jax.random.uniform(k3, (hidden, n_classes), dtype, -lim2, lim2)
    b2 = jax.random.uniform(k4, (n_classes,), dtype, -lim2, lim2)
    return w1, b1, w2, b2


if __name__ == "__main__":
    key = jax.random.PRNGKey(0)
    kx, kp = jax.random.split(key)

    # Small shapes consistent with the module: conv-feature-map style input.
    # (B, C, H, W) = (2, 16, 4, 4)  ->  in_size = 256 (module default is 256*4*4).
    B, C_in, Hs, Ws = 2, 16, 4, 4
    in_size = C_in * Hs * Ws
    hidden, n_classes = 100, 10

    x = jax.random.normal(kx, (B, C_in, Hs, Ws), jnp.float32)
    w1, b1, w2, b2 = init_params(kp, in_size, hidden, n_classes)

    params = prepare_params(w1, b1, w2, b2)          # one-time pad/cast of weights
    out = classifier_forward(x, params)
    out = jax.block_until_ready(out)
    assert out.shape == (B, n_classes)
    assert out.dtype == x.dtype

    # Reference with identical operand precision (bf16 MXU operands, f32 accum).
    x2d = x.reshape(B, -1)
    h_ref = jnp.dot(x2d.astype(jnp.bfloat16), w1.astype(jnp.bfloat16),
                    preferred_element_type=jnp.float32) + b1
    h_ref = jnp.maximum(h_ref, 0.0)
    ref = jnp.dot(h_ref.astype(jnp.bfloat16), w2.astype(jnp.bfloat16),
                  preferred_element_type=jnp.float32) + b2
    assert jnp.allclose(out.astype(jnp.float32), ref, atol=1e-3, rtol=1e-3), \
        float(jnp.max(jnp.abs(out.astype(jnp.float32) - ref)))

    # Loose check against the full-f32 torch semantics (eval-mode dropout).
    ref32 = jnp.maximum(x2d @ w1 + b1, 0.0) @ w2 + b2
    assert jnp.allclose(out.astype(jnp.float32), ref32, atol=3e-2, rtol=3e-2)

    print("KERNEL_OK")
</pallas_src>

<mosaic_0001>
module attributes {stable_mosaic.version = 11 : i64} {
  func.func @_fused_kernel(%arg0: i32, %arg1: memref<8x256xf32, #tpu.memory_space<vmem>>, %arg2: memref<256x128xbf16, #tpu.memory_space<vmem>>, %arg3: memref<1x128xf32, #tpu.memory_space<vmem>>, %arg4: memref<128x128xbf16, #tpu.memory_space<vmem>>, %arg5: memref<1x128xf32, #tpu.memory_space<vmem>>, %arg6: memref<8x128xf32, #tpu.memory_space<vmem>>) attributes {dimension_semantics = [#tpu.dimension_semantics<parallel>], iteration_bounds = array<i64: 1>, scalar_prefetch = 0 : i64, scratch_operands = 0 : i64, tpu.core_type = #tpu.core_type<tc>, window_params = [{transform_indices = @transform_0, window_bounds = array<i64: 8, 256>}, {pipeline_mode = #tpu.pipeline_mode<synchronous>, transform_indices = @transform_1, window_bounds = array<i64: 256, 128>}, {pipeline_mode = #tpu.pipeline_mode<synchronous>, transform_indices = @transform_2, window_bounds = array<i64: 1, 128>}, {pipeline_mode = #tpu.pipeline_mode<synchronous>, transform_indices = @transform_3, window_bounds = array<i64: 128, 128>}, {pipeline_mode = #tpu.pipeline_mode<synchronous>, transform_indices = @transform_4, window_bounds = array<i64: 1, 128>}, {transform_indices = @transform_5, window_bounds = array<i64: 8, 128>}]} {
    %c0 = arith.constant 0 : index
    %c0_0 = arith.constant 0 : index
    %0 = vector.load %arg1[%c0, %c0_0] : memref<8x256xf32, #tpu.memory_space<vmem>>, vector<8x256xf32>
    %1 = arith.truncf %0 : vector<8x256xf32> to vector<8x256xbf16>
    %c0_1 = arith.constant 0 : index
    %c0_2 = arith.constant 0 : index
    %2 = vector.load %arg2[%c0_1, %c0_2] : memref<256x128xbf16, #tpu.memory_space<vmem>>, vector<256x128xbf16>
    %cst = arith.constant dense<0.000000e+00> : vector<8x128xf32>
    %3 = tpu.matmul %1, %2, %cst {dimension_numbers = #tpu.dot_dimension_numbers<[1], [0], [0], [1], [0, 0, 1, 1], [], []>} : vector<8x256xbf16>, vector<256x128xbf16>, vector<8x128xf32> -> vector<8x128xf32>
    %c0_3 = arith.constant 0 : index
    %c0_4 = arith.constant 0 : index
    %4 = vector.load %arg3[%c0_3, %c0_4] : memref<1x128xf32, #tpu.memory_space<vmem>>, vector<1x128xf32>
    %5 = vector.broadcast %4 : vector<1x128xf32> to vector<8x128xf32>
    %6 = arith.addf %3, %5 : vector<8x128xf32>
    %cst_5 = arith.constant 0.000000e+00 : f32
    %7 = vector.broadcast %cst_5 : f32 to vector<8x128xf32>
    %8 = arith.maximumf %6, %7 : vector<8x128xf32>
    %9 = arith.truncf %8 : vector<8x128xf32> to vector<8x128xbf16>
    %c0_6 = arith.constant 0 : index
    %c0_7 = arith.constant 0 : index
    %10 = vector.load %arg4[%c0_6, %c0_7] : memref<128x128xbf16, #tpu.memory_space<vmem>>, vector<128x128xbf16>
    %cst_8 = arith.constant dense<0.000000e+00> : vector<8x128xf32>
    %11 = tpu.matmul %9, %10, %cst_8 {dimension_numbers = #tpu.dot_dimension_numbers<[1], [0], [0], [1], [0, 0, 1, 1], [], []>} : vector<8x128xbf16>, vector<128x128xbf16>, vector<8x128xf32> -> vector<8x128xf32>
    %c0_9 = arith.constant 0 : index
    %c0_10 = arith.constant 0 : index
    %12 = vector.load %arg5[%c0_9, %c0_10] : memref<1x128xf32, #tpu.memory_space<vmem>>, vector<1x128xf32>
    %13 = vector.broadcast %12 : vector<1x128xf32> to vector<8x128xf32>
    %14 = arith.addf %11, %13 : vector<8x128xf32>
    %c0_11 = arith.constant 0 : index
    %c0_12 = arith.constant 0 : index
    %15 = vector.load %arg6[%c0_11, %c0_12] : memref<8x128xf32, #tpu.memory_space<vmem>>, vector<8x128xf32>
    tpu.vector_store %arg6[%c0_11, %c0_12], %14 {strides = array<i32>} : memref<8x128xf32, #tpu.memory_space<vmem>>, vector<8x128xf32>,
    return
  }
  func.func @transform_0(%arg0: i32) -> (i32, i32) {
    %c0_i32 = arith.constant 0 : i32
    %c0_i32_0 = arith.constant 0 : i32
    return %arg0, %c0_i32 : i32, i32
  }
  func.func @transform_1(%arg0: i32) -> (i32, i32) {
    %c0_i32 = arith.constant 0 : i32
    %c0_i32_0 = arith.constant 0 : i32
    %c0_i32_1 = arith.constant 0 : i32
    return %c0_i32, %c0_i32_0 : i32, i32
  }
  func.func @transform_2(%arg0: i32) -> (i32, i32) {
    %c0_i32 = arith.constant 0 : i32
    %c0_i32_0 = arith.constant 0 : i32
    %c0_i32_1 = arith.constant 0 : i32
    return %c0_i32, %c0_i32_0 : i32, i32
  }
  func.func @transform_3(%arg0: i32) -> (i32, i32) {
    %c0_i32 = arith.constant 0 : i32
    %c0_i32_0 = arith.constant 0 : i32
    %c0_i32_1 = arith.constant 0 : i32
    return %c0_i32, %c0_i32_0 : i32, i32
  }
  func.func @transform_4(%arg0: i32) -> (i32, i32) {
    %c0_i32 = arith.constant 0 : i32
    %c0_i32_0 = arith.constant 0 : i32
    %c0_i32_1 = arith.constant 0 : i32
    return %c0_i32, %c0_i32_0 : i32, i32
  }
  func.func @transform_5(%arg0: i32) -> (i32, i32) {
    %c0_i32 = arith.constant 0 : i32
    %c0_i32_0 = arith.constant 0 : i32
    return %arg0, %c0_i32 : i32, i32
  }
}

</mosaic_0001>

<llo_original>
// kernel: tpu_custom_call.1
$region0: #{tpu_custom_call.1}
  #allocation0 [shape = 'u32[]', space=smem, size = 0x4, offset = 0x4, fixed_abs, tag = 'smem constant byte address 0x4 - core index']
  #allocation1 [shape = 'u32[144,128]{1,0:T(1,128)}', space=vmem, size = 0x12000, scoped, tag = 'internal scratch']
  %s0 = inlined_call_operand.hbm [shape: f32[8,256], index: 0, kind: input, shape index: {}]
  %s1 = inlined_call_operand.hbm [shape: bf16[256,128], index: 1, kind: input, shape index: {}]
  %s2 = inlined_call_operand.vmem [shape: f32[1,128], index: 2, kind: input, shape index: {}]
  %s3 = inlined_call_operand.hbm [shape: bf16[128,128], index: 3, kind: input, shape index: {}]
  %s4 = inlined_call_operand.vmem [shape: f32[1,128], index: 4, kind: input, shape index: {}]
  %s5 = inlined_call_operand.hbm [shape: f32[8,128], index: 5, kind: output, shape index: {}]
  %s6 = sld [smem:[#allocation0]]
  $region42: #{tpu_custom_call.1} parent=0
    _
  %s8 = ssub.s32 1, %s6
  %s9 = scalar_select 0, %s8, %s6
  $region1: #{tpu_custom_call.1} parent=0
    #allocation2 [shape = 'u8[8192]{0}', space=vmem, size = 0x2000, scoped, tag = 'input window, operand 0, single buffered']
    #allocation3 [shape = 's32[1]{0}', space=sflag, size = 0x4, scoped, tag = 'scoped memory for tpu_custom_call.1']
    #allocation4 [shape = 's32[1]{0}', space=sflag, size = 0x4, scoped, tag = 'scoped memory for tpu_custom_call.1']
    #allocation5 [shape = 'u8[65536]{0}', space=vmem, size = 0x10000, scoped, tag = 'input window, operand 1, single buffered']
    #allocation6 [shape = 's32[1]{0}', space=sflag, size = 0x4, scoped, tag = 'scoped memory for tpu_custom_call.1']
    #allocation7 [shape = 'u8[32768]{0}', space=vmem, size = 0x8000, scoped, tag = 'input window, operand 3, single buffered']
    #allocation8 [shape = 'u8[4096]{0}', space=vmem, size = 0x1000, scoped, tag = 'output window, operand 0, single buffered']
    %10 = vsyncpa [#allocation3], 0
    %11 = vsyncpa [#allocation6], 0
    %12 = vsyncpa [#allocation4], 0
    // Predicated region
    $region2: #{tpu_custom_call.1} parent=1 // pred_check
      _
    $region3: #{tpu_custom_call.1} parent=1 // pred_check_branch
      %14 = sbr.rel (0) target = $region5
    $region4: #{tpu_custom_call.1} parent=1 // pred_region
      %s16 = ssub.s32 256, 256
      %17 = vsyncadd [#allocation3], %s16
      %s19 = sshll.u32 [#allocation2], 4
      %s20 = int_to_ptr.vmem [resolvable:$true] %s19
      %22 = dma.hbm_to_vmem [thread:$0]  %s0, 256, %s20, [#allocation3]
    $region5: #{tpu_custom_call.1} parent=1 // pred_fallthru
      _
    // Predicated region
    $region6: #{tpu_custom_call.1} parent=1 // pred_check
      _
    $region7: #{tpu_custom_call.1} parent=1 // pred_check_branch
      %24 = sbr.rel (0) target = $region9
    $region8: #{tpu_custom_call.1} parent=1 // pred_region
      %s26 = ssub.s32 2048, 2048
      %27 = vsyncadd [#allocation6], %s26
      %s28 = sshll.u32 [#allocation5], 4
      %s29 = int_to_ptr.vmem [resolvable:$true] %s28
      %34 = dma.hbm_to_vmem [thread:$0]  %s1, 2048, %s29, [#allocation6], 64, 64, 4
    $region9: #{tpu_custom_call.1} parent=1 // pred_fallthru
      _
    // Predicated region
    $region10: #{tpu_custom_call.1} parent=1 // pred_check
      _
    $region11: #{tpu_custom_call.1} parent=1 // pred_check_branch
      %36 = sbr.rel (0) target = $region13
    $region12: #{tpu_custom_call.1} parent=1 // pred_region
      _
    $region13: #{tpu_custom_call.1} parent=1 // pred_fallthru
      _
    // Predicated region
    $region14: #{tpu_custom_call.1} parent=1 // pred_check
      _
    $region15: #{tpu_custom_call.1} parent=1 // pred_check_branch
      %38 = sbr.rel (0) target = $region17
    $region16: #{tpu_custom_call.1} parent=1 // pred_region
      %s40 = ssub.s32 1024, 1024
      %41 = vsyncadd [#allocation6], %s40
      %s42 = sshll.u32 [#allocation7], 4
      %s43 = int_to_ptr.vmem [resolvable:$true] %s42
      %48 = dma.hbm_to_vmem [thread:$0]  %s3, 1024, %s43, [#allocation6], 64, 64, 4
    $region17: #{tpu_custom_call.1} parent=1 // pred_fallthru
      _
    // Predicated region
    $region18: #{tpu_custom_call.1} parent=1 // pred_check
      _
    $region19: #{tpu_custom_call.1} parent=1 // pred_check_branch
      %50 = sbr.rel (0) target = $region21
    $region20: #{tpu_custom_call.1} parent=1 // pred_region
      _
    $region21: #{tpu_custom_call.1} parent=1 // pred_fallthru
      _
    // Predicated region
    $region22: #{tpu_custom_call.1} parent=1 // pred_check
      _
    $region23: #{tpu_custom_call.1} parent=1 // pred_check_branch
      %52 = sbr.rel (0) target = $region25
    $region24: #{tpu_custom_call.1} parent=1 // pred_region
      %53 = dma.done [#allocation3], 256
    $region25: #{tpu_custom_call.1} parent=1 // pred_fallthru
      _
    // Predicated region
    $region26: #{tpu_custom_call.1} parent=1 // pred_check
      _
    $region27: #{tpu_custom_call.1} parent=1 // pred_check_branch
      %55 = sbr.rel (0) target = $region29
    $region28: #{tpu_custom_call.1} parent=1 // pred_region
      %56 = dma.done [#allocation6], 2048
    $region29: #{tpu_custom_call.1} parent=1 // pred_fallthru
      _
    // Predicated region
    $region30: #{tpu_custom_call.1} parent=1 // pred_check
      _
    $region31: #{tpu_custom_call.1} parent=1 // pred_check_branch
      %58 = sbr.rel (0) target = $region33
    $region32: #{tpu_custom_call.1} parent=1 // pred_region
      %59 = dma.done [#allocation6], 1024
    $region33: #{tpu_custom_call.1} parent=1 // pred_fallthru
      _
    %v61 = vld [vmem:[#allocation2] sm:$0xff]
    %v62 = vld [vmem:[#allocation2 + $0x8] sm:$0xff]
    %v63 = vpack.c.bf16 %v61, %v61
    %v64 = vpack.c.bf16 %v62, %v62
    %v65 = vld [vmem:[#allocation5] sm:$0xf]
    %v66 = vld [vmem:[#allocation5 + $0x4] sm:$0xf]
    %v67 = vld [vmem:[#allocation5 + $0x8] sm:$0xf]
    %v68 = vld [vmem:[#allocation5 + $0xc] sm:$0xf]
    %v69 = vld [vmem:[#allocation5 + $0x10] sm:$0xf]
    %v70 = vld [vmem:[#allocation5 + $0x14] sm:$0xf]
    %v71 = vld [vmem:[#allocation5 + $0x18] sm:$0xf]
    %v72 = vld [vmem:[#allocation5 + $0x1c] sm:$0xf]
    %v73 = vld [vmem:[#allocation5 + $0x20] sm:$0xf]
    %v74 = vld [vmem:[#allocation5 + $0x24] sm:$0xf]
    %v75 = vld [vmem:[#allocation5 + $0x28] sm:$0xf]
    %v76 = vld [vmem:[#allocation5 + $0x2c] sm:$0xf]
    %v77 = vld [vmem:[#allocation5 + $0x30] sm:$0xf]
    %v78 = vld [vmem:[#allocation5 + $0x34] sm:$0xf]
    %v79 = vld [vmem:[#allocation5 + $0x38] sm:$0xf]
    %v80 = vld [vmem:[#allocation5 + $0x3c] sm:$0xf]
    %v81 = vld [vmem:[#allocation5 + $0x40] sm:$0xf]
    %v82 = vld [vmem:[#allocation5 + $0x44] sm:$0xf]
    %v83 = vld [vmem:[#allocation5 + $0x48] sm:$0xf]
    %v84 = vld [vmem:[#allocation5 + $0x4c] sm:$0xf]
    %v85 = vld [vmem:[#allocation5 + $0x50] sm:$0xf]
    %v86 = vld [vmem:[#allocation5 + $0x54] sm:$0xf]
    %v87 = vld [vmem:[#allocation5 + $0x58] sm:$0xf]
    %v88 = vld [vmem:[#allocation5 + $0x5c] sm:$0xf]
    %v89 = vld [vmem:[#allocation5 + $0x60] sm:$0xf]
    %v90 = vld [vmem:[#allocation5 + $0x64] sm:$0xf]
    %v91 = vld [vmem:[#allocation5 + $0x68] sm:$0xf]
    %v92 = vld [vmem:[#allocation5 + $0x6c] sm:$0xf]
    %v93 = vld [vmem:[#allocation5 + $0x70] sm:$0xf]
    %v94 = vld [vmem:[#allocation5 + $0x74] sm:$0xf]
    %v95 = vld [vmem:[#allocation5 + $0x78] sm:$0xf]
    %v96 = vld [vmem:[#allocation5 + $0x7c] sm:$0xf]
    %v97 = vld [vmem:[%s2] sm:$0x1]
    %v99 = vlaneseq
    %v100 = vshrl.u32 %v99, 7
    %v101 = vsub.s32 0, %v100
    %v102 = vrot.slane %v97, %v101
    %v136 = vunpack.c.l.b16 %v65
    %v137 = vunpack.c.l.b16 %v66
    %v138 = vunpack.c.l.b16 %v67
    %v139 = vunpack.c.l.b16 %v68
    %v140 = vunpack.c.l.b16 %v69
    %v141 = vunpack.c.l.b16 %v70
    %v142 = vunpack.c.l.b16 %v71
    %v143 = vunpack.c.l.b16 %v72
    %v144 = vunpack.c.l.b16 %v73
    %v145 = vunpack.c.l.b16 %v74
    %v146 = vunpack.c.l.b16 %v75
    %v147 = vunpack.c.l.b16 %v76
    %v148 = vunpack.c.l.b16 %v77
    %v149 = vunpack.c.l.b16 %v78
    %v150 = vunpack.c.l.b16 %v79
    %v151 = vunpack.c.l.b16 %v80
    %v152 = vunpack.c.l.b16 %v81
    %v153 = vunpack.c.l.b16 %v82
    %v154 = vunpack.c.l.b16 %v83
    %v155 = vunpack.c.l.b16 %v84
    %v156 = vunpack.c.l.b16 %v85
    %v157 = vunpack.c.l.b16 %v86
    %v158 = vunpack.c.l.b16 %v87
    %v159 = vunpack.c.l.b16 %v88
    %v160 = vunpack.c.l.b16 %v89
    %v161 = vunpack.c.l.b16 %v90
    %v162 = vunpack.c.l.b16 %v91
    %v163 = vunpack.c.l.b16 %v92
    %v164 = vunpack.c.l.b16 %v93
    %v165 = vunpack.c.l.b16 %v94
    %v166 = vunpack.c.l.b16 %v95
    %v167 = vunpack.c.l.b16 %v96
    %v168 = vpack.c.b16 %v137, %v136
    %v169 = vpack.c.b16 %v139, %v138
    %v170 = vpack.c.b16 %v141, %v140
    %v171 = vpack.c.b16 %v143, %v142
    %v172 = vpack.c.b16 %v145, %v144
    %v173 = vpack.c.b16 %v147, %v146
    %v174 = vpack.c.b16 %v149, %v148
    %v175 = vpack.c.b16 %v151, %v150
    %v176 = vpack.c.b16 %v153, %v152
    %v177 = vpack.c.b16 %v155, %v154
    %v178 = vpack.c.b16 %v157, %v156
    %v179 = vpack.c.b16 %v159, %v158
    %v180 = vpack.c.b16 %v161, %v160
    %v181 = vpack.c.b16 %v163, %v162
    %v182 = vpack.c.b16 %v165, %v164
    %v183 = vpack.c.b16 %v167, %v166
    %200 = vmatprep.subr.bf16.mxu0 0
    %201 = vmatpush1.bf16.msra.mxu0 %v168
    %202 = vmatprep.subr.bf16.mxu0 0
    %203 = vmatpush1.bf16.msra.mxu0 %v169
    %204 = vmatprep.subr.bf16.mxu0 0
    %205 = vmatpush1.bf16.msra.mxu0 %v170
    %206 = vmatprep.subr.bf16.mxu0 0
    %207 = vmatpush1.bf16.msra.mxu0 %v171
    %208 = vmatprep.subr.bf16.mxu0 0
    %209 = vmatpush1.bf16.msra.mxu0 %v172
    %210 = vmatprep.subr.bf16.mxu0 0
    %211 = vmatpush1.bf16.msra.mxu0 %v173
    %212 = vmatprep.subr.bf16.mxu0 0
    %213 = vmatpush1.bf16.msra.mxu0 %v174
    %214 = vmatprep.subr.bf16.mxu0 0
    %215 = vmatpush1.bf16.msra.mxu0 %v175
    %216 = vmatprep.subr.bf16.mxu0 0
    %217 = vmatpush1.bf16.msra.mxu0 %v176
    %218 = vmatprep.subr.bf16.mxu0 0
    %219 = vmatpush1.bf16.msra.mxu0 %v177
    %220 = vmatprep.subr.bf16.mxu0 0
    %221 = vmatpush1.bf16.msra.mxu0 %v178
    %222 = vmatprep.subr.bf16.mxu0 0
    %223 = vmatpush1.bf16.msra.mxu0 %v179
    %224 = vmatprep.subr.bf16.mxu0 0
    %225 = vmatpush1.bf16.msra.mxu0 %v180
    %226 = vmatprep.subr.bf16.mxu0 0
    %227 = vmatpush1.bf16.msra.mxu0 %v181
    %228 = vmatprep.subr.bf16.mxu0 0
    %229 = vmatpush1.bf16.msra.mxu0 %v182
    %230 = vmatprep.subr.bf16.mxu0 0
    %231 = vmatpush1.bf16.msra.mxu0 %v183
    %232 = vmatprep.mubr.bf16.mxu0 %v64
    %233 = vmatmul.mubr.bf16.gmra.mrb[0].mxu0 %v63
    %v234 = vpop.f32.mrb[0].mxu0
    %v235 = vadd.f32 %v102, %v234
    %v236 = vpop.f32.mrb[0].mxu0
    %v237 = vpop.f32.mrb[0].mxu0
    %v238 = vpop.f32.mrb[0].mxu0
    %239 = vdwg.mxu0
    %v240 = vmax.f32 %v235, 0.0
    %v241 = vpack.c.bf16 %v240, %v240
    %v242 = vld [vmem:[#allocation7] sm:$0xf]
    %v243 = vld [vmem:[#allocation7 + $0x4] sm:$0xf]
    %v244 = vld [vmem:[#allocation7 + $0x8] sm:$0xf]
    %v245 = vld [vmem:[#allocation7 + $0xc] sm:$0xf]
    %v246 = vld [vmem:[#allocation7 + $0x10] sm:$0xf]
    %v247 = vld [vmem:[#allocation7 + $0x14] sm:$0xf]
    %v248 = vld [vmem:[#allocation7 + $0x18] sm:$0xf]
    %v249 = vld [vmem:[#allocation7 + $0x1c] sm:$0xf]
    %v250 = vld [vmem:[#allocation7 + $0x20] sm:$0xf]
    %v251 = vld [vmem:[#allocation7 + $0x24] sm:$0xf]
    %v252 = vld [vmem:[#allocation7 + $0x28] sm:$0xf]
    %v253 = vld [vmem:[#allocation7 + $0x2c] sm:$0xf]
    %v254 = vld [vmem:[#allocation7 + $0x30] sm:$0xf]
    %v255 = vld [vmem:[#allocation7 + $0x34] sm:$0xf]
    %v256 = vld [vmem:[#allocation7 + $0x38] sm:$0xf]
    %v257 = vld [vmem:[#allocation7 + $0x3c] sm:$0xf]
    %v258 = vld [vmem:[%s4] sm:$0x1]
    %v260 = vlaneseq
    %v261 = vshrl.u32 %v260, 7
    %v262 = vsub.s32 0, %v261
    %v263 = vrot.slane %v258, %v262
    %v281 = vunpack.c.l.b16 %v242
    %v282 = vunpack.c.l.b16 %v243
    %v283 = vunpack.c.l.b16 %v244
    %v284 = vunpack.c.l.b16 %v245
    %v285 = vunpack.c.l.b16 %v246
    %v286 = vunpack.c.l.b16 %v247
    %v287 = vunpack.c.l.b16 %v248
    %v288 = vunpack.c.l.b16 %v249
    %v289 = vunpack.c.l.b16 %v250
    %v290 = vunpack.c.l.b16 %v251
    %v291 = vunpack.c.l.b16 %v252
    %v292 = vunpack.c.l.b16 %v253
    %v293 = vunpack.c.l.b16 %v254
    %v294 = vunpack.c.l.b16 %v255
    %v295 = vunpack.c.l.b16 %v256
    %v296 = vunpack.c.l.b16 %v257
    %v297 = vpack.c.b16 %v282, %v281
    %v298 = vpack.c.b16 %v284, %v283
    %v299 = vpack.c.b16 %v286, %v285
    %v300 = vpack.c.b16 %v288, %v287
    %v301 = vpack.c.b16 %v290, %v289
    %v302 = vpack.c.b16 %v292, %v291
    %v303 = vpack.c.b16 %v294, %v293
    %v304 = vpack.c.b16 %v296, %v295
    %313 = vmatprep.subr.bf16.mxu0 0
    %314 = vmatpush1.bf16.msra.mxu0 %v297
    %315 = vmatprep.subr.bf16.mxu0 0
    %316 = vmatpush1.bf16.msra.mxu0 %v298
    %317 = vmatprep.subr.bf16.mxu0 0
    %318 = vmatpush1.bf16.msra.mxu0 %v299
    %319 = vmatprep.subr.bf16.mxu0 0
    %320 = vmatpush1.bf16.msra.mxu0 %v300
    %321 = vmatprep.subr.bf16.mxu0 0
    %322 = vmatpush1.bf16.msra.mxu0 %v301
    %323 = vmatprep.subr.bf16.mxu0 0
    %324 = vmatpush1.bf16.msra.mxu0 %v302
    %325 = vmatprep.subr.bf16.mxu0 0
    %326 = vmatpush1.bf16.msra.mxu0 %v303
    %327 = vmatprep.subr.bf16.mxu0 0
    %328 = vmatpush1.bf16.msra.mxu0 %v304
    %329 = vmatprep.subr.bf16.mxu0 0
    %330 = vmatpush1.bf16.msra.mxu0 0
    %331 = vmatprep.subr.bf16.mxu0 0
    %332 = vmatpush1.bf16.msra.mxu0 0
    %333 = vmatprep.subr.bf16.mxu0 0
    %334 = vmatpush1.bf16.msra.mxu0 0
    %335 = vmatprep.subr.bf16.mxu0 0
    %336 = vmatpush1.bf16.msra.mxu0 0
    %337 = vmatprep.subr.bf16.mxu0 0
    %338 = vmatpush1.bf16.msra.mxu0 0
    %339 = vmatprep.subr.bf16.mxu0 0
    %340 = vmatpush1.bf16.msra.mxu0 0
    %341 = vmatprep.subr.bf16.mxu0 0
    %342 = vmatpush1.bf16.msra.mxu0 0
    %343 = vmatprep.subr.bf16.mxu0 0
    %344 = vmatpush1.bf16.msra.mxu0 0
    %345 = vmatprep.mubr.bf16.mxu0 0
    %346 = vmatmul.mubr.bf16.gmra.mrb[0].mxu0 %v241
    %v347 = vpop.f32.mrb[0].mxu0
    %v348 = vadd.f32 %v263, %v347
    %v349 = vpop.f32.mrb[0].mxu0
    %v350 = vpop.f32.mrb[0].mxu0
    %v351 = vpop.f32.mrb[0].mxu0
    %352 = vdwg.mxu0
    %353 = vst [vmem:[#allocation8] sm:$0xff] %v348
    // Predicated region
    $region34: #{tpu_custom_call.1} parent=1 // pred_check
      _
    $region35: #{tpu_custom_call.1} parent=1 // pred_check_branch
      %355 = sbr.rel (0) target = $region37
    $region36: #{tpu_custom_call.1} parent=1 // pred_region
      %s357 = ssub.s32 128, 128
      %358 = vsyncadd [#allocation4], %s357
      %s360 = sshll.u32 [#allocation8], 4
      %s361 = int_to_ptr.vmem [resolvable:$true] %s360
      %363 = dma.vmem_to_hbm [thread:$0]  %s361, 128, %s5, [#allocation4]
    $region37: #{tpu_custom_call.1} parent=1 // pred_fallthru
      _
    // Predicated region
    $region38: #{tpu_custom_call.1} parent=1 // pred_check
      _
    $region39: #{tpu_custom_call.1} parent=1 // pred_check_branch
      %365 = sbr.rel (0) target = $region41
    $region40: #{tpu_custom_call.1} parent=1 // pred_region
      %366 = dma.done [#allocation4], 128
    $region41: #{tpu_custom_call.1} parent=1 // pred_fallthru
      _
    %367 = vsyncpa [#allocation3], 1
    %368 = vsyncpa [#allocation6], 1
    %369 = vsyncpa [#allocation4], 1

</llo_original>
